<compile_context>
chip_gen: v7x
topology: tpu7x:2x2x1
jax: 0.10.0
libtpu: 0.0.40
codegen_flags: <defaults>
</compile_context>

<pallas_src>
import math
import functools

import jax
import jax.numpy as jnp
from jax import lax
from jax.experimental import pallas as pl
from jax.experimental.pallas import tpu as pltpu


def _fit(dim, target):
    """Tile size: `target` if it divides `dim`, else fall back to the full dim
    (full-extent blocks always satisfy the (8,128) BlockSpec constraint)."""
    return target if dim % target == 0 else dim


# ----------------------------------------------------------------------------
# Kernel 1: dense linear projection  y = x @ W^T + b   (tiled over M, Dout, Din)
# ----------------------------------------------------------------------------
def _linear_kernel(x_ref, w_ref, b_ref, o_ref, acc_ref):
    k = pl.program_id(2)

    @pl.when(k == 0)
    def _():
        acc_ref[...] = jnp.zeros_like(acc_ref)

    # x:(tm,tk) , w:(tn,tk)  ->  (tm,tn); contracting dim 1 on both sides is the
    # MXU-native "trans_b" form: no XLU transpose of the weight tile.
    acc_ref[...] += lax.dot_general(
        x_ref[...], w_ref[...],
        dimension_numbers=(((1,), (1,)), ((), ())),
        preferred_element_type=jnp.float32)

    @pl.when(k == pl.num_programs(2) - 1)
    def _():
        o_ref[...] = (acc_ref[...] + b_ref[...].astype(jnp.float32)).astype(o_ref.dtype)


def linear(x2d, w, b, *, tm=256, tn=256, tk=512):
    """x2d: (M, Din), w: (Dout, Din), b: (Dout,) -> (M, Dout)."""
    M, Din = x2d.shape
    Dout = w.shape[0]
    tm, tn, tk = _fit(M, tm), _fit(Dout, tn), _fit(Din, tk)
    grid = (M // tm, Dout // tn, Din // tk)
    return pl.pallas_call(
        _linear_kernel,
        out_shape=jax.ShapeDtypeStruct((M, Dout), x2d.dtype),
        grid_spec=pltpu.PrefetchScalarGridSpec(
            num_scalar_prefetch=0,
            grid=grid,
            in_specs=[
                pl.BlockSpec((tm, tk), lambda i, j, k: (i, k)),
                pl.BlockSpec((tn, tk), lambda i, j, k: (j, k)),
                pl.BlockSpec((1, tn), lambda i, j, k: (0, j)),
            ],
            out_specs=pl.BlockSpec((tm, tn), lambda i, j, k: (i, j)),
            scratch_shapes=[pltpu.VMEM((tm, tn), jnp.float32)],
        ),
        compiler_params=pltpu.CompilerParams(
            dimension_semantics=("parallel", "parallel", "arbitrary"),
        ),
    )(x2d, w, b.reshape(1, Dout))


# ----------------------------------------------------------------------------
# Kernel 2: multi-head scaled-dot-product attention
#   grid = (B, Nq_tiles); all heads handled inside one step from the merged
#   (B, N, embed_dim) layout -> no head-split/merge transposes through HBM.
# ----------------------------------------------------------------------------
def _attn_kernel(q_ref, k_ref, v_ref, o_ref, aw_ref, *, num_head, ch, scale):
    q = q_ref[0]          # (tq, E)
    k = k_ref[0]          # (Nk, E)
    v = v_ref[0]          # (Nk, E)

    # Static unroll over heads (num_head is small); per-head slices of the
    # feature axis are static, zero-cost ref/array slices.
    for h in range(num_head):
        lo = h * ch
        qh = q[:, lo:lo + ch] * scale          # scale folded into q (tq*ch muls)
        kh = k[:, lo:lo + ch]
        vh = v[:, lo:lo + ch]

        # q @ k^T without transposing k (contracting dim 1 on both sides).
        s = lax.dot_general(
            qh, kh,
            dimension_numbers=(((1,), (1,)), ((), ())),
            preferred_element_type=jnp.float32)          # (tq, Nk), f32

        m = jnp.max(s, axis=-1, keepdims=True)
        e = jnp.exp(s - m)
        denom = jnp.sum(e, axis=-1, keepdims=True)
        attn = e / denom                                  # exact f32 normalize

        out = jnp.dot(attn.astype(vh.dtype), vh,
                      preferred_element_type=jnp.float32)  # (tq, ch)

        aw_ref[0, h] = attn.astype(aw_ref.dtype)
        o_ref[0, :, lo:lo + ch] = out.astype(o_ref.dtype)  # write merged layout


def multi_head_attention(Q, K, V, num_head, *, tq_target=256):
    """Q/K/V: (B, N, E) merged layout -> (outputs (B, Nq, E), attn (B, H, Nq, Nk))."""
    B, Nq, E = Q.shape
    Nk = K.shape[1]
    ch = E // num_head
    scale = 1.0 / math.sqrt(ch)
    tq = _fit(Nq, tq_target)

    kernel = functools.partial(_attn_kernel, num_head=num_head, ch=ch, scale=scale)

    out, attn = pl.pallas_call(
        kernel,
        out_shape=(
            jax.ShapeDtypeStruct((B, Nq, E), Q.dtype),
            jax.ShapeDtypeStruct((B, num_head, Nq, Nk), Q.dtype),
        ),
        grid_spec=pltpu.PrefetchScalarGridSpec(
            num_scalar_prefetch=0,
            grid=(B, Nq // tq),
            in_specs=[
                pl.BlockSpec((1, tq, E), lambda b, qi: (b, qi, 0)),
                pl.BlockSpec((1, Nk, E), lambda b, qi: (b, 0, 0)),
                pl.BlockSpec((1, Nk, E), lambda b, qi: (b, 0, 0)),
            ],
            out_specs=[
                pl.BlockSpec((1, tq, E), lambda b, qi: (b, qi, 0)),
                pl.BlockSpec((1, num_head, tq, Nk), lambda b, qi: (b, 0, qi, 0)),
            ],
        ),
        compiler_params=pltpu.CompilerParams(
            dimension_semantics=("parallel", "parallel"),
        ),
    )(Q, K, V)
    return out, attn


# ----------------------------------------------------------------------------
# Module-level forward (param setup + the two pallas_calls; no transposes)
# ----------------------------------------------------------------------------
def xavier_uniform(key, shape, dtype=jnp.float32):
    fan_out, fan_in = shape
    limit = math.sqrt(6.0 / (fan_in + fan_out))
    return jax.random.uniform(key, shape, dtype=dtype, minval=-limit, maxval=limit)


def init_params(key, qdim, kdim, vdim, embed_dim):
    kq, kk, kv = jax.random.split(key, 3)
    return {
        "Qw": xavier_uniform(kq, (embed_dim, qdim)),
        "Qb": jnp.zeros((embed_dim,), jnp.float32),
        "Kw": xavier_uniform(kk, (embed_dim, kdim)),
        "Kb": jnp.zeros((embed_dim,), jnp.float32),
        "Vw": xavier_uniform(kv, (embed_dim, vdim)),
        "Vb": jnp.zeros((embed_dim,), jnp.float32),
    }


def multi_head_attn_forward(params, q, k, v, num_head, embed_dim):
    B, Nq, _ = q.shape
    Nk = k.shape[1]

    # projections (tiled Pallas matmul kernel)
    Q = linear(q.reshape(B * Nq, -1), params["Qw"], params["Qb"]).reshape(B, Nq, embed_dim)
    K = linear(k.reshape(B * Nk, -1), params["Kw"], params["Kb"]).reshape(B, Nk, embed_dim)
    V = linear(v.reshape(B * Nk, -1), params["Vw"], params["Vb"]).reshape(B, Nk, embed_dim)

    # attention consumes / produces the merged (B, N, E) layout directly.
    outputs, attn = multi_head_attention(Q, K, V, num_head)

    if num_head == 1:
        attn = attn[:, 0]     # match torch module: no head axis when num_head == 1
    return outputs, attn


# ----------------------------------------------------------------------------
# Reference (plain JAX) for sanity-checking — mirrors the torch module exactly
# ----------------------------------------------------------------------------
def reference_forward(params, q, k, v, num_head, embed_dim):
    B, Nq, _ = q.shape
    Nk = k.shape[1]
    ch = embed_dim // num_head
    Q = q @ params["Qw"].T + params["Qb"]
    K = k @ params["Kw"].T + params["Kb"]
    V = v @ params["Vw"].T + params["Vb"]
    if num_head > 1:
        Qh = Q.reshape(B, Nq, num_head, ch).transpose(0, 2, 1, 3)
        Kh = K.reshape(B, Nk, num_head, ch).transpose(0, 2, 1, 3)
        Vh = V.reshape(B, Nk, num_head, ch).transpose(0, 2, 1, 3)
    else:
        Qh, Kh, Vh = Q, K, V
    scores = jnp.einsum("...qc,...kc->...qk", Qh, Kh) / math.sqrt(ch if num_head > 1 else embed_dim)
    attn = jax.nn.softmax(scores, axis=-1)
    out_h = jnp.einsum("...qk,...kc->...qc", attn, Vh)
    if num_head > 1:
        outputs = out_h.transpose(0, 2, 1, 3).reshape(B, Nq, embed_dim)
    else:
        outputs = out_h
    return outputs, attn


if __name__ == "__main__":
    # small shapes: batch=2, seq=8, qdim=kdim=vdim=16, embed_dim=32, heads=4
    B, N = 2, 8
    qdim = kdim = vdim = 16
    embed_dim, num_head = 32, 4

    key = jax.random.PRNGKey(0)
    kp, kq, kk, kv = jax.random.split(key, 4)

    params = init_params(kp, qdim, kdim, vdim, embed_dim)
    q = jax.random.normal(kq, (B, N, qdim), jnp.float32)
    k = jax.random.normal(kk, (B, N, kdim), jnp.float32)
    v = jax.random.normal(kv, (B, N, vdim), jnp.float32)

    outputs, attn_weights = multi_head_attn_forward(params, q, k, v, num_head, embed_dim)
    outputs = jax.block_until_ready(outputs)
    attn_weights = jax.block_until_ready(attn_weights)

    ref_out, ref_attn = reference_forward(params, q, k, v, num_head, embed_dim)
    assert outputs.shape == (B, N, embed_dim)
    assert attn_weights.shape == (B, num_head, N, N)
    assert jnp.allclose(outputs, ref_out, atol=2e-3, rtol=2e-3)
    assert jnp.allclose(attn_weights, ref_attn, atol=2e-3, rtol=2e-3)

    print("KERNEL_OK")
</pallas_src>

<mosaic_0001>
module attributes {stable_mosaic.version = 11 : i64} {
  func.func @_linear_kernel(%arg0: i32, %arg1: i32, %arg2: i32, %arg3: memref<16x16xf32, #tpu.memory_space<vmem>>, %arg4: memref<32x16xf32, #tpu.memory_space<vmem>>, %arg5: memref<1x32xf32, #tpu.memory_space<vmem>>, %arg6: memref<16x32xf32, #tpu.memory_space<vmem>>, %arg7: memref<16x32xf32, #tpu.memory_space<vmem>>) attributes {dimension_semantics = [#tpu.dimension_semantics<parallel>, #tpu.dimension_semantics<parallel>, #tpu.dimension_semantics<arbitrary>], iteration_bounds = array<i64: 1, 1, 1>, scalar_prefetch = 0 : i64, scratch_operands = 1 : i64, tpu.core_type = #tpu.core_type<tc>, window_params = [{transform_indices = @transform_0, window_bounds = array<i64: 16, 16>}, {transform_indices = @transform_1, window_bounds = array<i64: 32, 16>}, {transform_indices = @transform_2, window_bounds = array<i64: 1, 32>}, {transform_indices = @transform_3, window_bounds = array<i64: 16, 32>}]} {
    %c0_i32 = arith.constant 0 : i32
    %0 = arith.cmpi eq, %arg2, %c0_i32 : i32
    %1 = arith.extui %0 : i1 to i32
    %c0_i32_0 = arith.constant 0 : i32
    %2 = arith.cmpi ne, %1, %c0_i32_0 : i32
    scf.if %2 {
      %cst_10 = arith.constant 0.000000e+00 : f32
      %12 = vector.broadcast %cst_10 : f32 to vector<16x32xf32>
      %c0_11 = arith.constant 0 : index
      %c0_12 = arith.constant 0 : index
      %13 = vector.load %arg7[%c0_11, %c0_12] : memref<16x32xf32, #tpu.memory_space<vmem>>, vector<16x32xf32>
      tpu.vector_store %arg7[%c0_11, %c0_12], %12 {strides = array<i32>} : memref<16x32xf32, #tpu.memory_space<vmem>>, vector<16x32xf32>,
    } else {
    }
    %c0 = arith.constant 0 : index
    %c0_1 = arith.constant 0 : index
    %3 = vector.load %arg7[%c0, %c0_1] : memref<16x32xf32, #tpu.memory_space<vmem>>, vector<16x32xf32>
    %c0_2 = arith.constant 0 : index
    %c0_3 = arith.constant 0 : index
    %4 = vector.load %arg3[%c0_2, %c0_3] : memref<16x16xf32, #tpu.memory_space<vmem>>, vector<16x16xf32>
    %c0_4 = arith.constant 0 : index
    %c0_5 = arith.constant 0 : index
    %5 = vector.load %arg4[%c0_4, %c0_5] : memref<32x16xf32, #tpu.memory_space<vmem>>, vector<32x16xf32>
    %cst = arith.constant dense<0.000000e+00> : vector<16x32xf32>
    %6 = tpu.matmul %4, %5, %cst {dimension_numbers = #tpu.dot_dimension_numbers<[1], [1], [0], [0], [0, 0, 1, 0], [], []>} : vector<16x16xf32>, vector<32x16xf32>, vector<16x32xf32> -> vector<16x32xf32>
    %7 = arith.addf %3, %6 : vector<16x32xf32>
    %c0_6 = arith.constant 0 : index
    %c0_7 = arith.constant 0 : index
    %8 = vector.load %arg7[%c0_6, %c0_7] : memref<16x32xf32, #tpu.memory_space<vmem>>, vector<16x32xf32>
    tpu.vector_store %arg7[%c0_6, %c0_7], %7 {strides = array<i32>} : memref<16x32xf32, #tpu.memory_space<vmem>>, vector<16x32xf32>,
    %c0_i32_8 = arith.constant 0 : i32
    %9 = arith.cmpi eq, %arg2, %c0_i32_8 : i32
    %10 = arith.extui %9 : i1 to i32
    %c0_i32_9 = arith.constant 0 : i32
    %11 = arith.cmpi ne, %10, %c0_i32_9 : i32
    scf.if %11 {
      %c0_10 = arith.constant 0 : index
      %c0_11 = arith.constant 0 : index
      %12 = vector.load %arg7[%c0_10, %c0_11] : memref<16x32xf32, #tpu.memory_space<vmem>>, vector<16x32xf32>
      %c0_12 = arith.constant 0 : index
      %c0_13 = arith.constant 0 : index
      %13 = vector.load %arg5[%c0_12, %c0_13] : memref<1x32xf32, #tpu.memory_space<vmem>>, vector<1x32xf32>
      %14 = vector.broadcast %13 : vector<1x32xf32> to vector<16x32xf32>
      %15 = arith.addf %12, %14 : vector<16x32xf32>
      %c0_14 = arith.constant 0 : index
      %c0_15 = arith.constant 0 : index
      %16 = vector.load %arg6[%c0_14, %c0_15] : memref<16x32xf32, #tpu.memory_space<vmem>>, vector<16x32xf32>
      tpu.vector_store %arg6[%c0_14, %c0_15], %15 {strides = array<i32>} : memref<16x32xf32, #tpu.memory_space<vmem>>, vector<16x32xf32>,
    } else {
    }
    return
  }
  func.func @transform_0(%arg0: i32, %arg1: i32, %arg2: i32) -> (i32, i32) {
    %c0_i32 = arith.constant 0 : i32
    return %arg0, %arg2 : i32, i32
  }
  func.func @transform_1(%arg0: i32, %arg1: i32, %arg2: i32) -> (i32, i32) {
    %c0_i32 = arith.constant 0 : i32
    return %arg1, %arg2 : i32, i32
  }
  func.func @transform_2(%arg0: i32, %arg1: i32, %arg2: i32) -> (i32, i32) {
    %c0_i32 = arith.constant 0 : i32
    %c0_i32_0 = arith.constant 0 : i32
    return %c0_i32, %arg1 : i32, i32
  }
  func.func @transform_3(%arg0: i32, %arg1: i32, %arg2: i32) -> (i32, i32) {
    %c0_i32 = arith.constant 0 : i32
    return %arg0, %arg1 : i32, i32
  }
}

</mosaic_0001>

<llo_original>
// kernel: tpu_custom_call.1
$region0: #{tpu_custom_call.1}
  #allocation0 [shape = 'u32[]', space=smem, size = 0x4, offset = 0x4, fixed_abs, tag = 'smem constant byte address 0x4 - core index']
  #allocation1 [shape = 'u32[144,128]{1,0:T(1,128)}', space=vmem, size = 0x12000, scoped, tag = 'internal scratch']
  #allocation2 [shape = 'f32[16,32]{1,0:T(8,128)}', space=vmem, size = 0x2000, scoped, tag = 'scratch operand']
  %s0 = inlined_call_operand.vmem [shape: f32[16,16], index: 0, kind: input, shape index: {}]
  %s1 = inlined_call_operand.vmem [shape: f32[32,16], index: 1, kind: input, shape index: {}]
  %s2 = inlined_call_operand.vmem [shape: f32[1,32], index: 2, kind: input, shape index: {}]
  %s3 = inlined_call_operand.hbm [shape: f32[16,32], index: 3, kind: output, shape index: {}]
  %s4 = sld [smem:[#allocation0]]
  $region30: #{tpu_custom_call.1} parent=0
    _
  %s6 = ssub.s32 1, %s4
  %s7 = scalar_select 0, %s6, %s4
  $region1: #{tpu_custom_call.1} parent=0
    #allocation3 [shape = 'u8[8192]{0}', space=vmem, size = 0x2000, scoped, tag = 'output window, operand 0, single buffered']
    #allocation4 [shape = 's32[1]{0}', space=sflag, size = 0x4, scoped, tag = 'scoped memory for tpu_custom_call.1']
    %8 = vsyncpa [#allocation4], 0
    // Predicated region
    $region2: #{tpu_custom_call.1} parent=1 // pred_check
      _
    $region3: #{tpu_custom_call.1} parent=1 // pred_check_branch
      %10 = sbr.rel (0) target = $region5
    $region4: #{tpu_custom_call.1} parent=1 // pred_region
      _
    $region5: #{tpu_custom_call.1} parent=1 // pred_fallthru
      _
    // Predicated region
    $region6: #{tpu_custom_call.1} parent=1 // pred_check
      _
    $region7: #{tpu_custom_call.1} parent=1 // pred_check_branch
      %12 = sbr.rel (0) target = $region9
    $region8: #{tpu_custom_call.1} parent=1 // pred_region
      _
    $region9: #{tpu_custom_call.1} parent=1 // pred_fallthru
      _
    // Predicated region
    $region10: #{tpu_custom_call.1} parent=1 // pred_check
      _
    $region11: #{tpu_custom_call.1} parent=1 // pred_check_branch
      %14 = sbr.rel (0) target = $region13
    $region12: #{tpu_custom_call.1} parent=1 // pred_region
      _
    $region13: #{tpu_custom_call.1} parent=1 // pred_fallthru
      _
    %p15 = scmp.eq.s32.totalorder 0, 0
    // Predicated region
    $region14: #{tpu_custom_call.1} parent=1 // pred_check
      %p16 = pneg %p15
    $region15: #{tpu_custom_call.1} parent=1 // pred_check_branch
      %18 = sbr.rel (%p16) target = $region17
    $region16: #{tpu_custom_call.1} parent=1 // pred_region
      %vm19 = vcmask 261120
      %20 = vst.msk [vmem:[#allocation2] sm:$0xff] %vm19, 0.0
      %21 = vst.msk [vmem:[#allocation2 + $0x8] sm:$0xff] %vm19, 0.0
    $region17: #{tpu_custom_call.1} parent=1 // pred_fallthru
      _
    %v22 = vld [vmem:[#allocation2] sm:$0xff]
    %v23 = vld [vmem:[#allocation2 + $0x8] sm:$0xff]
    %v24 = vld [vmem:[%s0] sm:$0xff]
    %v25 = vld [vmem:[%s0 + $0x8] sm:$0xff]
    %v26 = vld [vmem:[%s1] sm:$0xff]
    %v27 = vld [vmem:[%s1 + $0x8] sm:$0xff]
    %v28 = vld [vmem:[%s1 + $0x10] sm:$0xff]
    %v29 = vld [vmem:[%s1 + $0x18] sm:$0xff]
    %vm30 = vcmask 130048
    %v32 = vsel %vm30, %v24, 0
    %v35 = vsel %vm30, %v25, 0
    %v38 = vsel %vm30, %v26, 0
    %v41 = vsel %vm30, %v27, 0
    %v44 = vsel %vm30, %v28, 0
    %v47 = vsel %vm30, %v29, 0
    %49 = vmatprep.subr.mxu0 0.0
    %50 = vmatpush1.xpose.msra.mxu0 %v38
    %51 = vmatprep.subr.mxu0 0.0
    %52 = vmatpush1.xpose.msra.mxu0 %v41
    %53 = vmatprep.subr.mxu0 0.0
    %54 = vmatpush1.xpose.msra.mxu0 %v44
    %55 = vmatprep.subr.mxu0 0.0
    %56 = vmatpush1.xpose.msra.mxu0 %v47
    %57 = vmatprep.subr.mxu0 0.0
    %58 = vmatpush1.xpose.msra.mxu0 0.0
    %59 = vmatprep.subr.mxu0 0.0
    %60 = vmatpush1.xpose.msra.mxu0 0.0
    %61 = vmatprep.subr.mxu0 0.0
    %62 = vmatpush1.xpose.msra.mxu0 0.0
    %63 = vmatprep.subr.mxu0 0.0
    %64 = vmatpush1.xpose.msra.mxu0 0.0
    %65 = vmatprep.subr.mxu0 0.0
    %66 = vmatpush1.xpose.msra.mxu0 0.0
    %67 = vmatprep.subr.mxu0 0.0
    %68 = vmatpush1.xpose.msra.mxu0 0.0
    %69 = vmatprep.subr.mxu0 0.0
    %70 = vmatpush1.xpose.msra.mxu0 0.0
    %71 = vmatprep.subr.mxu0 0.0
    %72 = vmatpush1.xpose.msra.mxu0 0.0
    %73 = vmatprep.subr.mxu0 0.0
    %74 = vmatpush1.xpose.msra.mxu0 0.0
    %75 = vmatprep.subr.mxu0 0.0
    %76 = vmatpush1.xpose.msra.mxu0 0.0
    %77 = vmatprep.subr.mxu0 0.0
    %78 = vmatpush1.xpose.msra.mxu0 0.0
    %79 = vmatprep.subr.mxu0 0.0
    %80 = vmatpush1.xpose.msra.mxu0 0.0
    %81 = vmatprep.subr.mxu0 0.0
    %82 = vmatpush1.xpose.msra.mxu0 0.0
    %83 = vmatprep.subr.mxu0 0.0
    %84 = vmatpush1.xpose.msra.mxu0 0.0
    %85 = vmatprep.subr.mxu0 0.0
    %86 = vmatpush1.xpose.msra.mxu0 0.0
    %87 = vmatprep.subr.mxu0 0.0
    %88 = vmatpush1.xpose.msra.mxu0 0.0
    %89 = vmatprep.subr.mxu0 0.0
    %90 = vmatpush1.xpose.msra.mxu0 0.0
    %91 = vmatprep.subr.mxu0 0.0
    %92 = vmatpush1.xpose.msra.mxu0 0.0
    %93 = vmatprep.subr.mxu0 0.0
    %94 = vmatpush1.xpose.msra.mxu0 0.0
    %95 = vmatprep.subr.mxu0 0.0
    %96 = vmatpush1.xpose.msra.mxu0 0.0
    %97 = vmatprep.subr.mxu0 0.0
    %98 = vmatpush1.xpose.msra.mxu0 0.0
    %99 = vmatprep.subr.mxu0 0.0
    %100 = vmatpush1.xpose.msra.mxu0 0.0
    %101 = vmatprep.subr.mxu0 0.0
    %102 = vmatpush1.xpose.msra.mxu0 0.0
    %103 = vmatprep.subr.mxu0 0.0
    %104 = vmatpush1.xpose.msra.mxu0 0.0
    %105 = vmatprep.subr.mxu0 0.0
    %106 = vmatpush1.xpose.msra.mxu0 0.0
    %107 = vmatprep.subr.mxu0 0.0
    %108 = vmatpush1.xpose.msra.mxu0 0.0
    %109 = vmatprep.subr.mxu0 0.0
    %110 = vmatpush1.xpose.msra.mxu0 0.0
    %111 = vmatprep.subr.mxu0 0.0
    %112 = vmatpush1.xpose.msra.mxu0 0.0
    %113 = vmatprep.mubr.f32.mxu0 0.0
    %114 = vmatmul.mubr.f32.gmra.mrb[0].mxu0 %v32
    %v115 = vpop.f32.mrb[0].mxu0
    %v116 = vadd.f32 0.0, %v115
    %v117 = vpop.f32.mrb[0].mxu0
    %118 = vmatprep.mubr.f32.mxu0 0.0
    %119 = vmatmul.mubr.f32.gmra.mrb[0].mxu0 %v35
    %v120 = vpop.f32.mrb[0].mxu0
    %v121 = vadd.f32 0.0, %v120
    %v122 = vpop.f32.mrb[0].mxu0
    %123 = vdwg.mxu0
    %v124 = vadd.f32 %v22, %v116
    %v125 = vadd.f32 %v23, %v121
    %vm126 = vcmask 261120
    %127 = vst.msk [vmem:[#allocation2] sm:$0xff] %vm126, %v124
    %128 = vst.msk [vmem:[#allocation2 + $0x8] sm:$0xff] %vm126, %v125
    // Predicated region
    $region18: #{tpu_custom_call.1} parent=1 // pred_check
      %p129 = pneg %p15
    $region19: #{tpu_custom_call.1} parent=1 // pred_check_branch
      %131 = sbr.rel (%p129) target = $region21
    $region20: #{tpu_custom_call.1} parent=1 // pred_region
      %v132 = vld [vmem:[#allocation2] sm:$0xff]
      %v133 = vld [vmem:[#allocation2 + $0x8] sm:$0xff]
      %v134 = vld [vmem:[%s2] sm:$0x1]
      %v136 = vlaneseq
      %v137 = vshrl.u32 %v136, 7
      %v138 = vsub.s32 0, %v137
      %v139 = vrot.slane %v134, %v138
      %v141 = vadd.f32 %v132, %v139
      %v142 = vadd.f32 %v133, %v139
      %143 = vst.msk [vmem:[#allocation3] sm:$0xff] %vm126, %v141
      %144 = vst.msk [vmem:[#allocation3 + $0x8] sm:$0xff] %vm126, %v142
    $region21: #{tpu_custom_call.1} parent=1 // pred_fallthru
      _
    // Predicated region
    $region22: #{tpu_custom_call.1} parent=1 // pred_check
      _
    $region23: #{tpu_custom_call.1} parent=1 // pred_check_branch
      %146 = sbr.rel (0) target = $region25
    $region24: #{tpu_custom_call.1} parent=1 // pred_region
      %s148 = ssub.s32 256, 256
      %149 = vsyncadd [#allocation4], %s148
      %s150 = sshll.u32 [#allocation3], 4
      %s151 = int_to_ptr.vmem [resolvable:$true] %s150
      %156 = dma.vmem_to_hbm [thread:$0]  %s151, 256, %s3, [#allocation4], 128, 128, 8
    $region25: #{tpu_custom_call.1} parent=1 // pred_fallthru
      _
    // Predicated region
    $region26: #{tpu_custom_call.1} parent=1 // pred_check
      _
    $region27: #{tpu_custom_call.1} parent=1 // pred_check_branch
      %158 = sbr.rel (0) target = $region29
    $region28: #{tpu_custom_call.1} parent=1 // pred_region
      %159 = dma.done [#allocation4], 256
    $region29: #{tpu_custom_call.1} parent=1 // pred_fallthru
      _
    %160 = vsyncpa [#allocation4], 1

</llo_original>
